<compile_context>
chip_gen: v5e
topology: v5e:2x2
jax: 0.10.0
libtpu: 0.0.40
codegen_flags: <defaults>
</compile_context>

<pallas_src>
import jax
import jax.numpy as jnp
from jax.experimental import pallas as pl
from jax.experimental.pallas import tpu as pltpu


# ----------------------------------------------------------------------------
# Fused forward kernel (single invocation, everything resident in VMEM/vregs)
# ----------------------------------------------------------------------------
def _noma_fused_kernel(act_ref, w2d_ref, wd_ref, wh_ref, b_ref, out_ref):
    B = act_ref.shape[0]
    D = act_ref.shape[1] // 4           # per-user symbol / CSI width
    H = w2d_ref.shape[1] // 3           # hidden width
    bf16 = jnp.bfloat16

    # ---- static bias offsets inside the single packed bias row --------------
    offs = {}
    o = 0
    for name, width in (("pow_b1", H), ("pow_b2", 1),
                        ("sdf_b1", H), ("sdf_b2", D),
                        ("sdn_b1", H), ("sdn_b2", D),
                        ("decf_b1", H), ("decf_b2", D),
                        ("decn_b1", H), ("decn_b2", D)):
        offs[name] = o
        o += width

    def bias(name, width):
        s = offs[name]
        return b_ref[:, s:s + width]                      # (1, width), broadcasts

    def mm(a_bf16, w_bf16):
        # bf16 MXU inputs, f32 accumulation.
        return jnp.dot(a_bf16, w_bf16, preferred_element_type=jnp.float32)

    # ---- unpack the activation slab (f32) ------------------------------------
    act = act_ref[...]                                    # (B, 4D)
    xn = act[:, 0 * D:1 * D]
    xf = act[:, 1 * D:2 * D]
    hn = act[:, 2 * D:3 * D]
    hf = act[:, 3 * D:4 * D]

    # ---- 1) power_factor_net([csi_n | csi_f]) -> alpha in (0, 1) -------------
    # Fused first layer: one (B,2D) x (2D,H) matmul instead of two.
    pow_in = jnp.concatenate([hn, hf], axis=1).astype(bf16)
    hp = jnp.maximum(mm(pow_in, w2d_ref[:, 0:H]) + bias("pow_b1", H), 0.0)
    z = mm(hp.astype(bf16), wh_ref[:, 4 * D:4 * D + 1]) + bias("pow_b2", 1)  # (B,1)
    # Numerically-stable sigmoid: exp(-|z|) never overflows.
    ez = jnp.exp(-jnp.abs(z))
    inv = pl.reciprocal(1.0 + ez, approx=False)
    alpha = jnp.where(z >= 0.0, inv, ez * inv)
    alpha = jnp.clip(alpha, 0.0, 1.0)            # keep sqrt(1-alpha) NaN-free
    sqrt_a = jnp.sqrt(alpha)                     # near-user power factor
    sqrt_b = jnp.sqrt(1.0 - alpha)               # far-user power factor

    # ---- 2-3) superposition coding + per-user channel (f32 elementwise) ------
    s = sqrt_a * xn + sqrt_b * xf
    y_n = hn * s
    y_f = hf * s

    # ---- 4 + 5a) batched far-symbol detection with sd_net_f ------------------
    # rows [0,B): far user (y_f, csi_f); rows [B,2B): near user (y_n, csi_n).
    # Built entirely in vregs (no VMEM scratch round-trip), one fused matmul.
    det_in = jnp.concatenate(
        [jnp.concatenate([y_f, y_n], axis=0),             # (2B, D)  received
         jnp.concatenate([hf, hn], axis=0)],              # (2B, D)  CSI
        axis=1).astype(bf16)                              # (2B, 2D)
    hdet = jnp.maximum(mm(det_in, w2d_ref[:, H:2 * H]) + bias("sdf_b1", H), 0.0)
    xf_hat = mm(hdet.astype(bf16), wh_ref[:, 0:D]) + bias("sdf_b2", D)  # (2B, D)
    xf_hat_f = xf_hat[0:B, :]
    xf_hat_n = xf_hat[B:2 * B, :]

    # ---- 4b) far user: decode its own symbol estimate ------------------------
    hdf = jnp.maximum(
        mm(xf_hat_f.astype(bf16), wd_ref[:, 0:H]) + bias("decf_b1", H), 0.0)
    out_f = mm(hdf.astype(bf16), wh_ref[:, 2 * D:3 * D]) + bias("decf_b2", D)

    # ---- 5b) near user: SIC-cancel far signal, detect + decode near signal ---
    y_sic = y_n - sqrt_b * hn * xf_hat_n
    sic_in = jnp.concatenate([y_sic, hn], axis=1).astype(bf16)        # (B, 2D)
    hdn = jnp.maximum(mm(sic_in, w2d_ref[:, 2 * H:3 * H]) + bias("sdn_b1", H), 0.0)
    xn_hat = mm(hdn.astype(bf16), wh_ref[:, D:2 * D]) + bias("sdn_b2", D)
    hdd = jnp.maximum(
        mm(xn_hat.astype(bf16), wd_ref[:, H:2 * H]) + bias("decn_b1", H), 0.0)
    out_n = mm(hdd.astype(bf16), wh_ref[:, 3 * D:4 * D]) + bias("decn_b2", D)

    # ---- single lane-packed output slab: [out_n | out_f | alpha] --------------
    out_ref[...] = jnp.concatenate([out_n, out_f, alpha],
                                   axis=1).astype(out_ref.dtype)


# ----------------------------------------------------------------------------
# Wrapper: one gridless pallas_call, 5 packed inputs, 1 packed output
# ----------------------------------------------------------------------------
def noma_forward(params, x_n, x_f, csi_n, csi_f):
    B, D = x_n.shape

    # Activation slab: [x_n | x_f | csi_n | csi_f]  (one XLA concat, one DMA).
    act = jnp.concatenate([x_n, x_f, csi_n, csi_f], axis=1)          # (B, 4D)

    vmem = pl.BlockSpec(memory_space=pltpu.MemorySpace.VMEM)
    out = pl.pallas_call(
        _noma_fused_kernel,
        out_shape=jax.ShapeDtypeStruct((B, 2 * D + 1), jnp.float32),
        in_specs=[vmem, vmem, vmem, vmem, vmem],
        out_specs=vmem,
    )(act, params["w2d"], params["wd"], params["wh"], params["bias"])

    out_n = out[:, 0:D]
    out_f = out[:, D:2 * D]
    alpha = out[:, 2 * D:2 * D + 1]
    return out_n, out_f, alpha


# ----------------------------------------------------------------------------
# Parameter construction: synthetic weights packed into 4 lane-dense slabs
# ----------------------------------------------------------------------------
def make_params(key, D, H):
    """Synthetic weights packed host-side:
       w2d  (2D, 3H) bf16: [pow_W1 | sdf_W1 | sdn_W1]   (first layers, K=2D)
       wd   (D,  2H) bf16: [decf_W1 | decn_W1]          (decoder first layers)
       wh   (H, 4D+1) bf16: [sdf_W2 | sdn_W2 | decf_W2 | decn_W2 | pow_W2]
       bias (1, 5H+4D+1) f32: all biases in one row (kernel offset order)."""
    ks = iter(jax.random.split(key, 32))

    def w(shape, scale=0.1):
        return (scale * jax.random.normal(next(ks), shape, jnp.float32)
                ).astype(jnp.bfloat16)

    def b(width, scale=0.01):
        return scale * jax.random.normal(next(ks), (1, width), jnp.float32)

    # First-layer weights with contraction dim 2D (rows = [input_a ; input_b]).
    pow_w1 = w((2 * D, H))     # input = [csi_n | csi_f]
    sdf_w1 = w((2 * D, H))     # input = [y     | csi  ]
    sdn_w1 = w((2 * D, H))     # input = [y_sic | csi  ]
    w2d = jnp.concatenate([pow_w1, sdf_w1, sdn_w1], axis=1)           # (2D, 3H)

    # Decoder first layers (contraction dim D).
    wd = jnp.concatenate([w((D, H)), w((D, H))], axis=1)              # (D, 2H)

    # Second layers (contraction dim H).
    wh = jnp.concatenate([w((H, D)),              # sd_net_f out
                          w((H, D)),              # sd_net_n out
                          w((H, D)),              # decoder_f out
                          w((H, D)),              # decoder_n out
                          w((H, 1))], axis=1)     # power_factor_net out  (H, 4D+1)

    # Biases, order must match the kernel's offset table.
    bias = jnp.concatenate(
        [b(H), b(1),            # pow_b1, pow_b2
         b(H), b(D),            # sdf_b1, sdf_b2
         b(H), b(D),            # sdn_b1, sdn_b2
         b(H), b(D),            # decf_b1, decf_b2
         b(H), b(D)], axis=1)   # decn_b1, decn_b2

    return {"w2d": w2d, "wd": wd, "wh": wh, "bias": bias}


# ----------------------------------------------------------------------------
if __name__ == "__main__":
    B, D, H = 2, 16, 32

    key = jax.random.PRNGKey(0)
    k_par, k_xn, k_xf, k_hn, k_hf = jax.random.split(key, 5)

    params = make_params(k_par, D, H)
    x_n = jax.random.normal(k_xn, (B, D), dtype=jnp.float32)
    x_f = jax.random.normal(k_xf, (B, D), dtype=jnp.float32)
    csi_n = jax.random.normal(k_hn, (B, D), dtype=jnp.float32)
    csi_f = 0.3 * jax.random.normal(k_hf, (B, D), dtype=jnp.float32)  # weaker far channel

    out_n, out_f, alpha = jax.jit(noma_forward)(params, x_n, x_f, csi_n, csi_f)
    jax.block_until_ready((out_n, out_f, alpha))

    assert out_n.shape == (B, D) and out_f.shape == (B, D) and alpha.shape == (B, 1)
    assert bool(jnp.all(jnp.isfinite(out_n)))
    assert bool(jnp.all(jnp.isfinite(out_f)))
    assert bool(jnp.all((alpha >= 0.0) & (alpha <= 1.0)))
    print("KERNEL_OK")
</pallas_src>

<mosaic_0001>
module attributes {stable_mosaic.version = 11 : i64} {
  func.func @_noma_fused_kernel(%arg0: memref<2x64xf32, #tpu.memory_space<vmem>>, %arg1: memref<32x96xbf16, #tpu.memory_space<vmem>>, %arg2: memref<16x64xbf16, #tpu.memory_space<vmem>>, %arg3: memref<32x65xbf16, #tpu.memory_space<vmem>>, %arg4: memref<1x225xf32, #tpu.memory_space<vmem>>, %arg5: memref<2x33xf32, #tpu.memory_space<vmem>>) attributes {dimension_semantics = [], scalar_prefetch = 0 : i64, scratch_operands = 0 : i64, tpu.core_type = #tpu.core_type<tc>} {
    %c0 = arith.constant 0 : index
    %c0_0 = arith.constant 0 : index
    %0 = vector.load %arg0[%c0, %c0_0] : memref<2x64xf32, #tpu.memory_space<vmem>>, vector<2x64xf32>
    %1 = vector.extract_strided_slice %0 {offsets = [0, 0], sizes = [2, 16], strides = [1, 1]} : vector<2x64xf32> to vector<2x16xf32>
    %2 = vector.extract_strided_slice %0 {offsets = [0, 16], sizes = [2, 16], strides = [1, 1]} : vector<2x64xf32> to vector<2x16xf32>
    %3 = vector.extract_strided_slice %0 {offsets = [0, 32], sizes = [2, 16], strides = [1, 1]} : vector<2x64xf32> to vector<2x16xf32>
    %4 = vector.extract_strided_slice %0 {offsets = [0, 48], sizes = [2, 16], strides = [1, 1]} : vector<2x64xf32> to vector<2x16xf32>
    %5 = tpu.concatenate %3, %4 in 1 : vector<2x16xf32>, vector<2x16xf32> -> vector<2x32xf32>
    %6 = arith.truncf %5 : vector<2x32xf32> to vector<2x32xbf16>
    %c0_1 = arith.constant 0 : index
    %c0_2 = arith.constant 0 : index
    %7 = vector.load %arg1[%c0_1, %c0_2] : memref<32x96xbf16, #tpu.memory_space<vmem>>, vector<32x32xbf16>
    %cst = arith.constant dense<0.000000e+00> : vector<2x32xf32>
    %8 = tpu.matmul %6, %7, %cst {dimension_numbers = #tpu.dot_dimension_numbers<[1], [0], [0], [1], [0, 0, 1, 1], [], []>} : vector<2x32xbf16>, vector<32x32xbf16>, vector<2x32xf32> -> vector<2x32xf32>
    %c0_3 = arith.constant 0 : index
    %c0_4 = arith.constant 0 : index
    %9 = vector.load %arg4[%c0_3, %c0_4] : memref<1x225xf32, #tpu.memory_space<vmem>>, vector<1x32xf32>
    %10 = vector.broadcast %9 : vector<1x32xf32> to vector<2x32xf32>
    %11 = arith.addf %8, %10 : vector<2x32xf32>
    %cst_5 = arith.constant 0.000000e+00 : f32
    %12 = vector.broadcast %cst_5 : f32 to vector<2x32xf32>
    %13 = arith.maximumf %11, %12 : vector<2x32xf32>
    %14 = arith.truncf %13 : vector<2x32xf32> to vector<2x32xbf16>
    %c0_6 = arith.constant 0 : index
    %c64 = arith.constant 64 : index
    %15 = vector.load %arg3[%c0_6, %c64] : memref<32x65xbf16, #tpu.memory_space<vmem>>, vector<32x1xbf16>
    %cst_7 = arith.constant dense<0.000000e+00> : vector<2x1xf32>
    %16 = tpu.matmul %14, %15, %cst_7 {dimension_numbers = #tpu.dot_dimension_numbers<[1], [0], [0], [1], [0, 0, 1, 1], [], []>} : vector<2x32xbf16>, vector<32x1xbf16>, vector<2x1xf32> -> vector<2x1xf32>
    %c0_8 = arith.constant 0 : index
    %c32 = arith.constant 32 : index
    %17 = vector.load %arg4[%c0_8, %c32] : memref<1x225xf32, #tpu.memory_space<vmem>>, vector<1x1xf32>
    %18 = vector.broadcast %17 : vector<1x1xf32> to vector<2x1xf32>
    %19 = arith.addf %16, %18 : vector<2x1xf32>
    %20 = math.absf %19 : vector<2x1xf32>
    %cst_9 = arith.constant 0.000000e+00 : f32
    %21 = vector.broadcast %cst_9 : f32 to vector<2x1xf32>
    %22 = arith.subf %21, %20 : vector<2x1xf32>
    %23 = math.exp %22 : vector<2x1xf32>
    %cst_10 = arith.constant 1.000000e+00 : f32
    %24 = vector.broadcast %cst_10 : f32 to vector<2x1xf32>
    %25 = arith.addf %24, %23 : vector<2x1xf32>
    %26 = tpu.reciprocal %25 : vector<2x1xf32> -> vector<2x1xf32>
    %cst_11 = arith.constant 0.000000e+00 : f32
    %27 = vector.broadcast %cst_11 : f32 to vector<2x1xf32>
    %28 = arith.cmpf oge, %19, %27 : vector<2x1xf32>
    %29 = arith.mulf %23, %26 : vector<2x1xf32>
    %30 = arith.select %28, %26, %29 : vector<2x1xi1>, vector<2x1xf32>
    %cst_12 = arith.constant 0.000000e+00 : f32
    %cst_13 = arith.constant 1.000000e+00 : f32
    %31 = vector.broadcast %cst_12 : f32 to vector<2x1xf32>
    %32 = arith.maximumf %31, %30 : vector<2x1xf32>
    %33 = vector.broadcast %cst_13 : f32 to vector<2x1xf32>
    %34 = arith.minimumf %33, %32 : vector<2x1xf32>
    %35 = math.sqrt %34 : vector<2x1xf32>
    %cst_14 = arith.constant 1.000000e+00 : f32
    %36 = vector.broadcast %cst_14 : f32 to vector<2x1xf32>
    %37 = arith.subf %36, %34 : vector<2x1xf32>
    %38 = math.sqrt %37 : vector<2x1xf32>
    %39 = vector.broadcast %35 : vector<2x1xf32> to vector<2x16xf32>
    %40 = arith.mulf %39, %1 : vector<2x16xf32>
    %41 = vector.broadcast %38 : vector<2x1xf32> to vector<2x16xf32>
    %42 = arith.mulf %41, %2 : vector<2x16xf32>
    %43 = arith.addf %40, %42 : vector<2x16xf32>
    %44 = arith.mulf %3, %43 : vector<2x16xf32>
    %45 = arith.mulf %4, %43 : vector<2x16xf32>
    %46 = tpu.concatenate %45, %44 in 0 : vector<2x16xf32>, vector<2x16xf32> -> vector<4x16xf32>
    %47 = tpu.concatenate %4, %3 in 0 : vector<2x16xf32>, vector<2x16xf32> -> vector<4x16xf32>
    %48 = tpu.concatenate %46, %47 in 1 : vector<4x16xf32>, vector<4x16xf32> -> vector<4x32xf32>
    %49 = arith.truncf %48 : vector<4x32xf32> to vector<4x32xbf16>
    %c0_15 = arith.constant 0 : index
    %c32_16 = arith.constant 32 : index
    %50 = vector.load %arg1[%c0_15, %c32_16] : memref<32x96xbf16, #tpu.memory_space<vmem>>, vector<32x32xbf16>
    %cst_17 = arith.constant dense<0.000000e+00> : vector<4x32xf32>
    %51 = tpu.matmul %49, %50, %cst_17 {dimension_numbers = #tpu.dot_dimension_numbers<[1], [0], [0], [1], [0, 0, 1, 1], [], []>} : vector<4x32xbf16>, vector<32x32xbf16>, vector<4x32xf32> -> vector<4x32xf32>
    %c0_18 = arith.constant 0 : index
    %c33 = arith.constant 33 : index
    %52 = vector.load %arg4[%c0_18, %c33] : memref<1x225xf32, #tpu.memory_space<vmem>>, vector<1x32xf32>
    %53 = vector.broadcast %52 : vector<1x32xf32> to vector<4x32xf32>
    %54 = arith.addf %51, %53 : vector<4x32xf32>
    %cst_19 = arith.constant 0.000000e+00 : f32
    %55 = vector.broadcast %cst_19 : f32 to vector<4x32xf32>
    %56 = arith.maximumf %54, %55 : vector<4x32xf32>
    %57 = arith.truncf %56 : vector<4x32xf32> to vector<4x32xbf16>
    %c0_20 = arith.constant 0 : index
    %c0_21 = arith.constant 0 : index
    %58 = vector.load %arg3[%c0_20, %c0_21] : memref<32x65xbf16, #tpu.memory_space<vmem>>, vector<32x16xbf16>
    %cst_22 = arith.constant dense<0.000000e+00> : vector<4x16xf32>
    %59 = tpu.matmul %57, %58, %cst_22 {dimension_numbers = #tpu.dot_dimension_numbers<[1], [0], [0], [1], [0, 0, 1, 1], [], []>} : vector<4x32xbf16>, vector<32x16xbf16>, vector<4x16xf32> -> vector<4x16xf32>
    %c0_23 = arith.constant 0 : index
    %c65 = arith.constant 65 : index
    %60 = vector.load %arg4[%c0_23, %c65] : memref<1x225xf32, #tpu.memory_space<vmem>>, vector<1x16xf32>
    %61 = vector.broadcast %60 : vector<1x16xf32> to vector<4x16xf32>
    %62 = arith.addf %59, %61 : vector<4x16xf32>
    %63 = vector.extract_strided_slice %62 {offsets = [0, 0], sizes = [2, 16], strides = [1, 1]} : vector<4x16xf32> to vector<2x16xf32>
    %64 = vector.extract_strided_slice %62 {offsets = [2, 0], sizes = [2, 16], strides = [1, 1]} : vector<4x16xf32> to vector<2x16xf32>
    %65 = arith.truncf %63 : vector<2x16xf32> to vector<2x16xbf16>
    %c0_24 = arith.constant 0 : index
    %c0_25 = arith.constant 0 : index
    %66 = vector.load %arg2[%c0_24, %c0_25] : memref<16x64xbf16, #tpu.memory_space<vmem>>, vector<16x32xbf16>
    %cst_26 = arith.constant dense<0.000000e+00> : vector<2x32xf32>
    %67 = tpu.matmul %65, %66, %cst_26 {dimension_numbers = #tpu.dot_dimension_numbers<[1], [0], [0], [1], [0, 0, 1, 1], [], []>} : vector<2x16xbf16>, vector<16x32xbf16>, vector<2x32xf32> -> vector<2x32xf32>
    %c0_27 = arith.constant 0 : index
    %c129 = arith.constant 129 : index
    %68 = vector.load %arg4[%c0_27, %c129] : memref<1x225xf32, #tpu.memory_space<vmem>>, vector<1x32xf32>
    %69 = vector.broadcast %68 : vector<1x32xf32> to vector<2x32xf32>
    %70 = arith.addf %67, %69 : vector<2x32xf32>
    %cst_28 = arith.constant 0.000000e+00 : f32
    %71 = vector.broadcast %cst_28 : f32 to vector<2x32xf32>
    %72 = arith.maximumf %70, %71 : vector<2x32xf32>
    %73 = arith.truncf %72 : vector<2x32xf32> to vector<2x32xbf16>
    %c0_29 = arith.constant 0 : index
    %c32_30 = arith.constant 32 : index
    %74 = vector.load %arg3[%c0_29, %c32_30] : memref<32x65xbf16, #tpu.memory_space<vmem>>, vector<32x16xbf16>
    %cst_31 = arith.constant dense<0.000000e+00> : vector<2x16xf32>
    %75 = tpu.matmul %73, %74, %cst_31 {dimension_numbers = #tpu.dot_dimension_numbers<[1], [0], [0], [1], [0, 0, 1, 1], [], []>} : vector<2x32xbf16>, vector<32x16xbf16>, vector<2x16xf32> -> vector<2x16xf32>
    %c0_32 = arith.constant 0 : index
    %c161 = arith.constant 161 : index
    %76 = vector.load %arg4[%c0_32, %c161] : memref<1x225xf32, #tpu.memory_space<vmem>>, vector<1x16xf32>
    %77 = vector.broadcast %76 : vector<1x16xf32> to vector<2x16xf32>
    %78 = arith.addf %75, %77 : vector<2x16xf32>
    %79 = vector.broadcast %38 : vector<2x1xf32> to vector<2x16xf32>
    %80 = arith.mulf %79, %3 : vector<2x16xf32>
    %81 = arith.mulf %80, %64 : vector<2x16xf32>
    %82 = arith.subf %44, %81 : vector<2x16xf32>
    %83 = tpu.concatenate %82, %3 in 1 : vector<2x16xf32>, vector<2x16xf32> -> vector<2x32xf32>
    %84 = arith.truncf %83 : vector<2x32xf32> to vector<2x32xbf16>
    %c0_33 = arith.constant 0 : index
    %c64_34 = arith.constant 64 : index
    %85 = vector.load %arg1[%c0_33, %c64_34] : memref<32x96xbf16, #tpu.memory_space<vmem>>, vector<32x32xbf16>
    %cst_35 = arith.constant dense<0.000000e+00> : vector<2x32xf32>
    %86 = tpu.matmul %84, %85, %cst_35 {dimension_numbers = #tpu.dot_dimension_numbers<[1], [0], [0], [1], [0, 0, 1, 1], [], []>} : vector<2x32xbf16>, vector<32x32xbf16>, vector<2x32xf32> -> vector<2x32xf32>
    %c0_36 = arith.constant 0 : index
    %c81 = arith.constant 81 : index
    %87 = vector.load %arg4[%c0_36, %c81] : memref<1x225xf32, #tpu.memory_space<vmem>>, vector<1x32xf32>
    %88 = vector.broadcast %87 : vector<1x32xf32> to vector<2x32xf32>
    %89 = arith.addf %86, %88 : vector<2x32xf32>
    %cst_37 = arith.constant 0.000000e+00 : f32
    %90 = vector.broadcast %cst_37 : f32 to vector<2x32xf32>
    %91 = arith.maximumf %89, %90 : vector<2x32xf32>
    %92 = arith.truncf %91 : vector<2x32xf32> to vector<2x32xbf16>
    %c0_38 = arith.constant 0 : index
    %c16 = arith.constant 16 : index
    %93 = vector.load %arg3[%c0_38, %c16] : memref<32x65xbf16, #tpu.memory_space<vmem>>, vector<32x16xbf16>
    %cst_39 = arith.constant dense<0.000000e+00> : vector<2x16xf32>
    %94 = tpu.matmul %92, %93, %cst_39 {dimension_numbers = #tpu.dot_dimension_numbers<[1], [0], [0], [1], [0, 0, 1, 1], [], []>} : vector<2x32xbf16>, vector<32x16xbf16>, vector<2x16xf32> -> vector<2x16xf32>
    %c0_40 = arith.constant 0 : index
    %c113 = arith.constant 113 : index
    %95 = vector.load %arg4[%c0_40, %c113] : memref<1x225xf32, #tpu.memory_space<vmem>>, vector<1x16xf32>
    %96 = vector.broadcast %95 : vector<1x16xf32> to vector<2x16xf32>
    %97 = arith.addf %94, %96 : vector<2x16xf32>
    %98 = arith.truncf %97 : vector<2x16xf32> to vector<2x16xbf16>
    %c0_41 = arith.constant 0 : index
    %c32_42 = arith.constant 32 : index
    %99 = vector.load %arg2[%c0_41, %c32_42] : memref<16x64xbf16, #tpu.memory_space<vmem>>, vector<16x32xbf16>
    %cst_43 = arith.constant dense<0.000000e+00> : vector<2x32xf32>
    %100 = tpu.matmul %98, %99, %cst_43 {dimension_numbers = #tpu.dot_dimension_numbers<[1], [0], [0], [1], [0, 0, 1, 1], [], []>} : vector<2x16xbf16>, vector<16x32xbf16>, vector<2x32xf32> -> vector<2x32xf32>
    %c0_44 = arith.constant 0 : index
    %c177 = arith.constant 177 : index
    %101 = vector.load %arg4[%c0_44, %c177] : memref<1x225xf32, #tpu.memory_space<vmem>>, vector<1x32xf32>
    %102 = vector.broadcast %101 : vector<1x32xf32> to vector<2x32xf32>
    %103 = arith.addf %100, %102 : vector<2x32xf32>
    %cst_45 = arith.constant 0.000000e+00 : f32
    %104 = vector.broadcast %cst_45 : f32 to vector<2x32xf32>
    %105 = arith.maximumf %103, %104 : vector<2x32xf32>
    %106 = arith.truncf %105 : vector<2x32xf32> to vector<2x32xbf16>
    %c0_46 = arith.constant 0 : index
    %c48 = arith.constant 48 : index
    %107 = vector.load %arg3[%c0_46, %c48] : memref<32x65xbf16, #tpu.memory_space<vmem>>, vector<32x16xbf16>
    %cst_47 = arith.constant dense<0.000000e+00> : vector<2x16xf32>
    %108 = tpu.matmul %106, %107, %cst_47 {dimension_numbers = #tpu.dot_dimension_numbers<[1], [0], [0], [1], [0, 0, 1, 1], [], []>} : vector<2x32xbf16>, vector<32x16xbf16>, vector<2x16xf32> -> vector<2x16xf32>
    %c0_48 = arith.constant 0 : index
    %c209 = arith.constant 209 : index
    %109 = vector.load %arg4[%c0_48, %c209] : memref<1x225xf32, #tpu.memory_space<vmem>>, vector<1x16xf32>
    %110 = vector.broadcast %109 : vector<1x16xf32> to vector<2x16xf32>
    %111 = arith.addf %108, %110 : vector<2x16xf32>
    %112 = tpu.concatenate %111, %78, %34 in 1 : vector<2x16xf32>, vector<2x16xf32>, vector<2x1xf32> -> vector<2x33xf32>
    %c0_49 = arith.constant 0 : index
    %c0_50 = arith.constant 0 : index
    %113 = vector.load %arg5[%c0_49, %c0_50] : memref<2x33xf32, #tpu.memory_space<vmem>>, vector<2x33xf32>
    tpu.vector_store %arg5[%c0_49, %c0_50], %112 {strides = array<i32>} : memref<2x33xf32, #tpu.memory_space<vmem>>, vector<2x33xf32>,
    return
  }
}

</mosaic_0001>

<llo_original>
// kernel: noma_forward.1
$region0: #{noma_forward.1}
  #allocation0 [shape = 'u32[]', space=smem, size = 0x4, offset = 0x4, fixed_abs, tag = 'smem constant byte address 0x4 - core index']
  #allocation1 [shape = 'u32[72,128]{1,0:T(1,128)}', space=vmem, size = 0x9000, scoped, tag = 'internal scratch']
  %s0 = inlined_call_operand.vmem [shape: f32[2,64], index: 0, kind: input, shape index: {}]
  %s1 = inlined_call_operand.hbm [shape: bf16[32,96], index: 1, kind: input, shape index: {}]
  %s2 = inlined_call_operand.vmem [shape: bf16[16,64], index: 2, kind: input, shape index: {}]
  %s3 = inlined_call_operand.hbm [shape: bf16[32,65], index: 3, kind: input, shape index: {}]
  %s4 = inlined_call_operand.vmem [shape: f32[1,225], index: 4, kind: input, shape index: {}]
  %s5 = inlined_call_operand.vmem [shape: f32[2,33], index: 5, kind: output, shape index: {}]
  %s6 = sld [smem:[#allocation0]]
  $region38: #{noma_forward.1} parent=0
    _
  %s8 = ssub.s32 1, %s6
  %s9 = scalar_select 0, %s8, %s6
  $region1: #{noma_forward.1} parent=0
    #allocation2 [shape = 'u8[8192]{0}', space=vmem, size = 0x2000, scoped, tag = 'input window, operand 1, single buffered']
    #allocation3 [shape = 's32[1]{0}', space=sflag, size = 0x4, scoped, tag = 'scoped memory for noma_forward.1']
    #allocation4 [shape = 'u8[8192]{0}', space=vmem, size = 0x2000, scoped, tag = 'input window, operand 3, single buffered']
    #allocation5 [shape = 's32[1]{0}', space=sflag, size = 0x4, scoped, tag = 'scoped memory for noma_forward.1']
    %10 = vsyncpa [#allocation3], 0
    %11 = vsyncpa [#allocation5], 0
    // Predicated region
    $region2: #{noma_forward.1} parent=1 // pred_check
      _
    $region3: #{noma_forward.1} parent=1 // pred_check_branch
      %13 = sbr.rel (0) target = $region5
    $region4: #{noma_forward.1} parent=1 // pred_region
      _
    $region5: #{noma_forward.1} parent=1 // pred_fallthru
      _
    // Predicated region
    $region6: #{noma_forward.1} parent=1 // pred_check
      _
    $region7: #{noma_forward.1} parent=1 // pred_check_branch
      %15 = sbr.rel (0) target = $region9
    $region8: #{noma_forward.1} parent=1 // pred_region
      %17 = vsyncadd [#allocation3], 0
      %s18 = sshll.u32 %s1, 4
      %s19 = int_to_ptr.hbm [resolvable:$true] %s18
      %s20 = sshll.u32 [#allocation2], 4
      %s21 = int_to_ptr.vmem [resolvable:$true] %s20
      %26 = dma.hbm_to_vmem [thread:$0]  %s19, 256, %s21, [#allocation3], 64, 64, 4
    $region9: #{noma_forward.1} parent=1 // pred_fallthru
      _
    // Predicated region
    $region10: #{noma_forward.1} parent=1 // pred_check
      _
    $region11: #{noma_forward.1} parent=1 // pred_check_branch
      %28 = sbr.rel (0) target = $region13
    $region12: #{noma_forward.1} parent=1 // pred_region
      _
    $region13: #{noma_forward.1} parent=1 // pred_fallthru
      _
    // Predicated region
    $region14: #{noma_forward.1} parent=1 // pred_check
      _
    $region15: #{noma_forward.1} parent=1 // pred_check_branch
      %30 = sbr.rel (0) target = $region17
    $region16: #{noma_forward.1} parent=1 // pred_region
      %32 = vsyncadd [#allocation5], 0
      %s33 = sshll.u32 %s3, 4
      %s34 = int_to_ptr.hbm [resolvable:$true] %s33
      %s35 = sshll.u32 [#allocation4], 4
      %s36 = int_to_ptr.vmem [resolvable:$true] %s35
      %41 = dma.hbm_to_vmem [thread:$0]  %s34, 256, %s36, [#allocation5], 64, 64, 4
    $region17: #{noma_forward.1} parent=1 // pred_fallthru
      _
    // Predicated region
    $region18: #{noma_forward.1} parent=1 // pred_check
      _
    $region19: #{noma_forward.1} parent=1 // pred_check_branch
      %43 = sbr.rel (0) target = $region21
    $region20: #{noma_forward.1} parent=1 // pred_region
      _
    $region21: #{noma_forward.1} parent=1 // pred_fallthru
      _
    // Predicated region
    $region22: #{noma_forward.1} parent=1 // pred_check
      _
    $region23: #{noma_forward.1} parent=1 // pred_check_branch
      %45 = sbr.rel (0) target = $region25
    $region24: #{noma_forward.1} parent=1 // pred_region
      %47 = dma.done [#allocation3], 256
    $region25: #{noma_forward.1} parent=1 // pred_fallthru
      _
    // Predicated region
    $region26: #{noma_forward.1} parent=1 // pred_check
      _
    $region27: #{noma_forward.1} parent=1 // pred_check_branch
      %49 = sbr.rel (0) target = $region29
    $region28: #{noma_forward.1} parent=1 // pred_region
      %51 = dma.done [#allocation5], 256
    $region29: #{noma_forward.1} parent=1 // pred_fallthru
      _
    %v53 = vld [vmem:[%s0] sm:$0x3]
    %55 = vrot.lane.b32.xlu0 %v53, 96
    %v56 = vpop.permute.xlu0 %55
    %vm58 = vcmask 130048
    %v59 = vpack.c.bf16 %v56, %v56
    %v60 = vld [vmem:[#allocation2] sm:$0xf]
    %v61 = vld [vmem:[#allocation2 + $0x4] sm:$0xf]
    %v62 = vld [vmem:[#allocation2 + $0x8] sm:$0xf]
    %v63 = vld [vmem:[#allocation2 + $0xc] sm:$0xf]
    %v64 = vld [vmem:[%s4] sm:$0x1]
    %v66 = vperm.slane %v64, 0
    %v72 = vunpack.c.l.b16 %v60
    %v73 = vunpack.c.l.b16 %v61
    %v74 = vunpack.c.l.b16 %v62
    %v75 = vunpack.c.l.b16 %v63
    %v76 = vpack.c.b16 %v73, %v72
    %v77 = vpack.c.b16 %v75, %v74
    %vm80 = vcmask 261120
    %v82 = vsel %vm80, %v59, 0
    %84 = vmatpush.bf16.msra.mxu0 0
    %85 = vmatpush.bf16.msra.mxu0 0
    %86 = vmatpush.bf16.msra.mxu0 0
    %87 = vmatpush.bf16.msra.mxu0 0
    %88 = vmatpush.bf16.msra.mxu0 0
    %89 = vmatpush.bf16.msra.mxu0 0
    %90 = vmatpush.bf16.msra.mxu0 %v77
    %91 = vmatpush.bf16.msra.mxu0 %v76
    %92 = vmatmul.bf16.gmra.mxu0 %v82
    %v93 = vpop.f32.mrf.mxu0
    %v94 = vadd.f32 %v66, %v93
    %v95 = vpop.f32.mrf.mxu0
    %96 = vdwg.mxu0
    %v97 = vmax.f32 %v94, 0.0
    %v98 = vpack.c.bf16 %v97, %v97
    %v99 = vld [vmem:[#allocation4] sm:$0xf]
    %v100 = vld [vmem:[#allocation4 + $0x4] sm:$0xf]
    %v101 = vld [vmem:[#allocation4 + $0x8] sm:$0xf]
    %v102 = vld [vmem:[#allocation4 + $0xc] sm:$0xf]
    %v107 = vunpack.c.l.b16 %v99
    %v108 = vunpack.c.l.b16 %v100
    %v109 = vunpack.c.l.b16 %v101
    %v110 = vunpack.c.l.b16 %v102
    %v111 = vpack.c.b16 %v108, %v107
    %v112 = vpack.c.b16 %v110, %v109
    %113 = vrot.lane.b32.xlu0 %v111, 64
    %v114 = vpop.permute.xlu0 %113
    %115 = vrot.lane.b32.xlu0 %v112, 64
    %v116 = vpop.permute.xlu0 %115
    %119 = vrot.lane.b32.xlu0 %v66, 96
    %v120 = vpop.permute.xlu0 %119
    %v123 = vsel %vm80, %v98, 0
    %125 = vmatpush.bf16.msra.mxu0 0
    %126 = vmatpush.bf16.msra.mxu0 0
    %127 = vmatpush.bf16.msra.mxu0 0
    %128 = vmatpush.bf16.msra.mxu0 0
    %129 = vmatpush.bf16.msra.mxu0 0
    %130 = vmatpush.bf16.msra.mxu0 0
    %131 = vmatpush.bf16.msra.mxu0 %v116
    %132 = vmatpush.bf16.msra.mxu0 %v114
    %133 = vmatmul.bf16.gmra.mxu0 %v123
    %v134 = vpop.f32.mrf.mxu0
    %v135 = vadd.f32 %v120, %v134
    %v136 = vpop.f32.mrf.mxu0
    %137 = vdwg.mxu0
    %v138 = vand.u32 2147483647, %v135
    %v139 = vsub.f32 0.0, %v138
    %v140 = vmul.f32 %v139, 1.442695
    %v141 = vpow.pop %v140
    %v142 = vadd.f32 %v141, 1.0
    %v143 = vrcp.pop %v142
    %v144 = vmul.f32 %v142, %v143
    %v145 = vsub.f32 1.0, %v144
    %v146 = vmul.f32 %v143, %v145
    %v147 = vadd.f32 %v143, %v146
    %vm148 = vweird.f32 %v142
    %vm149 = vweird.f32 %v143
    %vm150 = vmor %vm148, %vm149
    %v151 = vsel %vm150, %v143, %v147
    %v152 = vand.u32 2147483647, %v142
    %vm153 = vcmp.eq.f32.partialorder %v152, 8.507059e+37
    %v154 = vand.u32 %v142, 2147483648
    %v155 = vor.u32 1.1754944e-38, %v154
    %v156 = vsel %vm153, %v155, %v151
    %vm157 = vcmp.ge.f32.partialorder %v135, 0.0
    %v158 = vmul.f32 %v141, %v156
    %v159 = vsel %vm157, %v156, %v158
    %v160 = vmax.f32 %v159, 0.0
    %v161 = vmin.f32 %v160, 1.0
    %v162 = vrsqrt.pop %v161
    %v163 = vmul.f32 %v162, %v161
    %v164 = vmul.f32 %v163, %v162
    %v165 = vmul.f32 0.5, %v164
    %v166 = vsub.f32 1.5, %v165
    %v167 = vmul.f32 %v162, %v166
    %v168 = vmul.f32 %v161, %v167
    %vm169 = vcmp.eq.f32.partialorder %v161, inf
    %v170 = vsel %vm169, %v161, %v168
    %vm171 = vcmp.eq.f32.partialorder %v161, 0.0
    %v172 = vand.u32 %v161, 2147483648
    %v173 = vsel %vm171, %v172, %v170
    %v174 = vsub.f32 1.0, %v161
    %v175 = vrsqrt.pop %v174
    %v176 = vmul.f32 %v175, %v174
    %v177 = vmul.f32 %v176, %v175
    %v178 = vmul.f32 0.5, %v177
    %v179 = vsub.f32 1.5, %v178
    %v180 = vmul.f32 %v175, %v179
    %v181 = vmul.f32 %v174, %v180
    %vm182 = vcmp.eq.f32.partialorder %v174, inf
    %v183 = vsel %vm182, %v174, %v181
    %vm184 = vcmp.eq.f32.partialorder %v174, 0.0
    %v185 = vand.u32 %v174, 2147483648
    %v186 = vsel %vm184, %v185, %v183
    %188 = vset.pattern.permute.xlu0 0
    %189 = vperm.xlu0 %188, %v173
    %v190 = vpop.permute.xlu0 %189
    %v192 = vmul.f32 %v190, %v53
    %194 = vset.pattern.permute.xlu0 0
    %195 = vperm.xlu0 %194, %v186
    %v196 = vpop.permute.xlu0 %195
    %v198 = vmul.f32 %v196, %v53
    %200 = vrot.lane.b32.xlu0 %v198, 112
    %v201 = vpop.permute.xlu0 %200
    %v203 = vadd.f32 %v192, %v201
    %205 = vrot.lane.b32.xlu0 %v203, 32
    %v206 = vpop.permute.xlu0 %205
    %v208 = vmul.f32 %v53, %v206
    %209 = vrot.lane.b32.xlu0 %v203, 48
    %v210 = vpop.permute.xlu0 %209
    %v212 = vmul.f32 %v53, %v210
    %v214 = vrot.slane %v208, 6
    %215 = vrot.lane.b32.xlu0 %v214, 16
    %v216 = vpop.permute.xlu0 %215
    %vm218 = vcmask 1041408
    %v219 = vsel %vm218, %v212, %v216
    %v220 = vrot.slane %v53, 6
    %221 = vrot.lane.b32.xlu0 %v220, 16
    %v222 = vpop.permute.xlu0 %221
    %v224 = vsel %vm218, %v53, %v222
    %226 = vrot.lane.b32.xlu0 %v219, 80
    %v227 = vpop.permute.xlu0 %226
    %230 = vrot.lane.b32.xlu0 %v224, 96
    %v231 = vpop.permute.xlu0 %230
    %v233 = vsel %vm58, %v227, %v231
    %v234 = vpack.c.bf16 %v233, %v233
    %235 = vrot.lane.b32.xlu0 %v76, 96
    %v236 = vpop.permute.xlu0 %235
    %237 = vrot.lane.b32.xlu0 %v77, 96
    %v238 = vpop.permute.xlu0 %237
    %241 = vrot.lane.b32.xlu0 %v66, 95
    %v242 = vpop.permute.xlu0 %241
    %v245 = vsel %vm80, %v234, 0
    %247 = vmatpush.bf16.msra.mxu0 0
    %248 = vmatpush.bf16.msra.mxu0 0
    %249 = vmatpush.bf16.msra.mxu0 0
    %250 = vmatpush.bf16.msra.mxu0 0
    %251 = vmatpush.bf16.msra.mxu0 0
    %252 = vmatpush.bf16.msra.mxu0 0
    %253 = vmatpush.bf16.msra.mxu0 %v238
    %254 = vmatpush.bf16.msra.mxu0 %v236
    %255 = vmatmul.bf16.gmra.mxu0 %v245
    %v256 = vpop.f32.mrf.mxu0
    %v257 = vadd.f32 %v242, %v256
    %v258 = vpop.f32.mrf.mxu0
    %259 = vdwg.mxu0
    %v260 = vmax.f32 %v257, 0.0
    %v261 = vpack.c.bf16 %v260, %v260
    %264 = vrot.lane.b32.xlu0 %v66, 63
    %v265 = vpop.permute.xlu0 %264
    %v268 = vsel %vm80, %v261, 0
    %270 = vmatpush.bf16.msra.mxu0 0
    %271 = vmatpush.bf16.msra.mxu0 0
    %272 = vmatpush.bf16.msra.mxu0 0
    %273 = vmatpush.bf16.msra.mxu0 0
    %274 = vmatpush.bf16.msra.mxu0 0
    %275 = vmatpush.bf16.msra.mxu0 0
    %276 = vmatpush.bf16.msra.mxu0 %v112
    %277 = vmatpush.bf16.msra.mxu0 %v111
    %278 = vmatmul.bf16.gmra.mxu0 %v268
    %v279 = vpop.f32.mrf.mxu0
    %v280 = vadd.f32 %v265, %v279
    %v281 = vpop.f32.mrf.mxu0
    %282 = vdwg.mxu0
    %v283 = vpack.c.bf16 %v280, %v280
    %v284 = vld [vmem:[%s2] sm:$0xf]
    %v285 = vld [vmem:[%s2 + $0x4] sm:$0xf]
    %v286 = vld [vmem:[%s4 + $0x1] sm:$0x1]
    %v288 = vperm.slane %v286, 0
    %v291 = vunpack.c.l.b16 %v284
    %v292 = vunpack.c.l.b16 %v285
    %v293 = vpack.c.b16 %v292, %v291
    %295 = vrot.lane.b32.xlu0 %v288, 127
    %v296 = vpop.permute.xlu0 %295
    %v299 = vsel %vm58, %v283, 0
    %301 = vmatpush.bf16.msra.mxu0 0
    %302 = vmatpush.bf16.msra.mxu0 0
    %303 = vmatpush.bf16.msra.mxu0 0
    %304 = vmatpush.bf16.msra.mxu0 0
    %305 = vmatpush.bf16.msra.mxu0 0
    %306 = vmatpush.bf16.msra.mxu0 0
    %307 = vmatpush.bf16.msra.mxu0 0
    %308 = vmatpush.bf16.msra.mxu0 %v293
    %309 = vmatmul.bf16.gmra.mxu0 %v299
    %v310 = vpop.f32.mrf.mxu0
    %v311 = vadd.f32 %v296, %v310
    %v312 = vpop.f32.mrf.mxu0
    %313 = vdwg.mxu0
    %v314 = vmax.f32 %v311, 0.0
    %v315 = vpack.c.bf16 %v314, %v314
    %316 = vrot.lane.b32.xlu0 %v111, 96
    %v317 = vpop.permute.xlu0 %316
    %318 = vrot.lane.b32.xlu0 %v112, 96
    %v319 = vpop.permute.xlu0 %318
    %322 = vrot.lane.b32.xlu0 %v288, 95
    %v323 = vpop.permute.xlu0 %322
    %v326 = vsel %vm80, %v315, 0
    %328 = vmatpush.bf16.msra.mxu0 0
    %329 = vmatpush.bf16.msra.mxu0 0
    %330 = vmatpush.bf16.msra.mxu0 0
    %331 = vmatpush.bf16.msra.mxu0 0
    %332 = vmatpush.bf16.msra.mxu0 0
    %333 = vmatpush.bf16.msra.mxu0 0
    %334 = vmatpush.bf16.msra.mxu0 %v319
    %335 = vmatpush.bf16.msra.mxu0 %v317
    %336 = vmatmul.bf16.gmra.mxu0 %v326
    %v337 = vpop.f32.mrf.mxu0
    %v338 = vadd.f32 %v323, %v337
    %v339 = vpop.f32.mrf.mxu0
    %340 = vdwg.mxu0
    %v342 = vrot.slane %v280, 2
    %343 = vrot.lane.b32.xlu0 %v342, 32
    %v344 = vpop.permute.xlu0 %343
    %v346 = vmul.f32 %v198, %v344
    %v347 = vsub.f32 %v208, %v346
    %349 = vrot.lane.b32.xlu0 %v347, 96
    %v350 = vpop.permute.xlu0 %349
    %352 = vrot.lane.b32.xlu0 %v53, 112
    %v353 = vpop.permute.xlu0 %352
    %v355 = vsel %vm58, %v350, %v353
    %v356 = vpack.c.bf16 %v355, %v355
    %357 = vrot.lane.b32.xlu0 %v76, 64
    %v358 = vpop.permute.xlu0 %357
    %359 = vrot.lane.b32.xlu0 %v77, 64
    %v360 = vpop.permute.xlu0 %359
    %363 = vrot.lane.b32.xlu0 %v66, 47
    %v364 = vpop.permute.xlu0 %363
    %v367 = vsel %vm80, %v356, 0
    %369 = vmatpush.bf16.msra.mxu0 0
    %370 = vmatpush.bf16.msra.mxu0 0
    %371 = vmatpush.bf16.msra.mxu0 0
    %372 = vmatpush.bf16.msra.mxu0 0
    %373 = vmatpush.bf16.msra.mxu0 0
    %374 = vmatpush.bf16.msra.mxu0 0
    %375 = vmatpush.bf16.msra.mxu0 %v360
    %376 = vmatpush.bf16.msra.mxu0 %v358
    %377 = vmatmul.bf16.gmra.mxu0 %v367
    %v378 = vpop.f32.mrf.mxu0
    %v379 = vadd.f32 %v364, %v378
    %v380 = vpop.f32.mrf.mxu0
    %381 = vdwg.mxu0
    %v382 = vmax.f32 %v379, 0.0
    %v383 = vpack.c.bf16 %v382, %v382
    %v384 = vld [vmem:[%s4] sm:$0x3]
    %v386 = vperm.slane %v384, 0
    %v387 = vperm.slane %v384, 1
    %388 = vrot.lane.b32.xlu0 %v111, 112
    %v389 = vpop.permute.xlu0 %388
    %390 = vrot.lane.b32.xlu0 %v112, 112
    %v391 = vpop.permute.xlu0 %390
    %394 = vrot.lane.b32.xlu0 %v386, 15
    %v395 = vpop.permute.xlu0 %394
    %396 = vrot.lane.b32.xlu0 %v387, 15
    %v397 = vpop.permute.xlu0 %396
    %vm398 = vcmask 121856
    %v399 = vsel %vm398, %v395, %v397
    %v402 = vsel %vm80, %v383, 0
    %404 = vmatpush.bf16.msra.mxu0 0
    %405 = vmatpush.bf16.msra.mxu0 0
    %406 = vmatpush.bf16.msra.mxu0 0
    %407 = vmatpush.bf16.msra.mxu0 0
    %408 = vmatpush.bf16.msra.mxu0 0
    %409 = vmatpush.bf16.msra.mxu0 0
    %410 = vmatpush.bf16.msra.mxu0 %v391
    %411 = vmatpush.bf16.msra.mxu0 %v389
    %412 = vmatmul.bf16.gmra.mxu0 %v402
    %v413 = vpop.f32.mrf.mxu0
    %v414 = vadd.f32 %v399, %v413
    %v415 = vpop.f32.mrf.mxu0
    %416 = vdwg.mxu0
    %v417 = vpack.c.bf16 %v414, %v414
    %418 = vrot.lane.b32.xlu0 %v293, 96
    %v419 = vpop.permute.xlu0 %418
    %421 = vrot.lane.b32.xlu0 %v288, 79
    %v422 = vpop.permute.xlu0 %421
    %v425 = vsel %vm58, %v417, 0
    %427 = vmatpush.bf16.msra.mxu0 0
    %428 = vmatpush.bf16.msra.mxu0 0
    %429 = vmatpush.bf16.msra.mxu0 0
    %430 = vmatpush.bf16.msra.mxu0 0
    %431 = vmatpush.bf16.msra.mxu0 0
    %432 = vmatpush.bf16.msra.mxu0 0
    %433 = vmatpush.bf16.msra.mxu0 0
    %434 = vmatpush.bf16.msra.mxu0 %v419
    %435 = vmatmul.bf16.gmra.mxu0 %v425
    %v436 = vpop.f32.mrf.mxu0
    %v437 = vadd.f32 %v422, %v436
    %v438 = vpop.f32.mrf.mxu0
    %439 = vdwg.mxu0
    %v440 = vmax.f32 %v437, 0.0
    %v441 = vpack.c.bf16 %v440, %v440
    %442 = vrot.lane.b32.xlu0 %v111, 80
    %v443 = vpop.permute.xlu0 %442
    %444 = vrot.lane.b32.xlu0 %v112, 80
    %v445 = vpop.permute.xlu0 %444
    %448 = vrot.lane.b32.xlu0 %v288, 47
    %v449 = vpop.permute.xlu0 %448
    %v452 = vsel %vm80, %v441, 0
    %454 = vmatpush.bf16.msra.mxu0 0
    %455 = vmatpush.bf16.msra.mxu0 0
    %456 = vmatpush.bf16.msra.mxu0 0
    %457 = vmatpush.bf16.msra.mxu0 0
    %458 = vmatpush.bf16.msra.mxu0 0
    %459 = vmatpush.bf16.msra.mxu0 0
    %460 = vmatpush.bf16.msra.mxu0 %v445
    %461 = vmatpush.bf16.msra.mxu0 %v443
    %462 = vmatmul.bf16.gmra.mxu0 %v452
    %v463 = vpop.f32.mrf.mxu0
    %v464 = vadd.f32 %v449, %v463
    %v465 = vpop.f32.mrf.mxu0
    %466 = vdwg.mxu0
    %468 = vrot.lane.b32.xlu0 %v338, 16
    %v469 = vpop.permute.xlu0 %468
    %472 = vrot.lane.b32.xlu0 %v161, 32
    %v473 = vpop.permute.xlu0 %472
    %v475 = vsel %vm58, %v464, %v469
    %v476 = vsel %vm80, %v475, %v473
    %vm477 = vcmask 263168
    %478 = vst.msk [vmem:[%s5] sm:$0x3] %vm477, %v476
    // Predicated region
    $region30: #{noma_forward.1} parent=1 // pred_check
      _
    $region31: #{noma_forward.1} parent=1 // pred_check_branch
      %480 = sbr.rel (0) target = $region33
    $region32: #{noma_forward.1} parent=1 // pred_region
      _
    $region33: #{noma_forward.1} parent=1 // pred_fallthru
      _
    // Predicated region
    $region34: #{noma_forward.1} parent=1 // pred_check
      _
    $region35: #{noma_forward.1} parent=1 // pred_check_branch
      %482 = sbr.rel (0) target = $region37
    $region36: #{noma_forward.1} parent=1 // pred_region
      _
    $region37: #{noma_forward.1} parent=1 // pred_fallthru
      _
    %483 = vsyncpa [#allocation3], 1
    %484 = vsyncpa [#allocation5], 1

</llo_original>
